<compile_context>
chip_gen: v7x
topology: tpu7x:2x2x1
jax: 0.10.0
libtpu: 0.0.40
codegen_flags: <defaults>
</compile_context>

<pallas_src>
import functools
import math

import jax
import jax.numpy as jnp
from jax import lax
from jax.experimental import pallas as pl
from jax.experimental.pallas import tpu as pltpu


D_MODEL = 32
MAX_LEN = 5000
DROPOUT_P = 0.1


def make_positional_encoding_table(d_model: int, max_len: int) -> jnp.ndarray:
    """Replicates the PyTorch buffer `pe` of shape [max_len, 1, d_model]."""
    position = jnp.arange(max_len, dtype=jnp.float32)[:, None]            # [max_len, 1]
    div_term = jnp.exp(
        jnp.arange(0, d_model, 2, dtype=jnp.float32) * (-math.log(10000.0) / d_model)
    )                                                                     # [d_model/2]
    pe = jnp.zeros((max_len, 1, d_model), dtype=jnp.float32)
    pe = pe.at[:, 0, 0::2].set(jnp.sin(position * div_term))
    pe = pe.at[:, 0, 1::2].set(jnp.cos(position * div_term))
    return pe


def _pos_enc_kernel(seed_ref, x_ref, pe_ref, o_ref, *,
                    d_model: int, keep_threshold: int, inv_keep: float, train: bool):
    # x_ref / o_ref : [tile_rows, batch*d_model]   (lane-dense)
    # pe_ref        : [tile_rows, d_model]         (tiny, tiled only along seq)
    rows, width = x_ref.shape

    x = x_ref[...]
    pe = pe_ref[...]

    # Replicate pe across the batch replicas flattened into the lane axis:
    #   pe_tiled[r, c] = pe[r, c % d_model]
    # Build a {0,1} one-hot selector [d_model, width] from iotas and push it
    # through the MXU (idle in this elementwise kernel). Exact in f32.
    col = lax.broadcasted_iota(jnp.int32, (d_model, width), 1)
    row = lax.broadcasted_iota(jnp.int32, (d_model, width), 0)
    if d_model & (d_model - 1) == 0:
        col_mod = jnp.bitwise_and(col, d_model - 1)
    else:
        col_mod = col % d_model
    sel = (col_mod == row).astype(x.dtype)
    pe_tiled = jnp.dot(pe, sel, preferred_element_type=jnp.float32,
                       precision=lax.Precision.HIGHEST)
    y = x + pe_tiled.astype(x.dtype)

    if train and keep_threshold > 0:
        # Inverted dropout via a counter-based hash RNG:
        #   keep  <=>  hash(global_index, seed) >= round(p * 2^32)   (uint32 compare)
        # Global row offset folds pl.program_id in, so every seq tile gets an
        # independent mask from the same seed.
        row_off = (pl.program_id(0) * rows).astype(jnp.uint32)
        gr = lax.broadcasted_iota(jnp.int32, (rows, width), 0).astype(jnp.uint32) + row_off
        gc = lax.broadcasted_iota(jnp.int32, (rows, width), 1).astype(jnp.uint32)
        z = gr * jnp.uint32(width) + gc
        z = z ^ (seed_ref[0].astype(jnp.uint32) * jnp.uint32(0x9E3779B9))
        # lowbias32 finalizer (good avalanche, only mul/xor/shift).
        z = z ^ (z >> 16)
        z = z * jnp.uint32(0x7FEB352D)
        z = z ^ (z >> 15)
        z = z * jnp.uint32(0x846CA68B)
        z = z ^ (z >> 16)
        keep = z >= jnp.uint32(keep_threshold)
        y = jnp.where(keep, y * jnp.float32(inv_keep), jnp.zeros_like(y))

    o_ref[...] = y


def _choose_tile_rows(seq_len: int, row_bytes: int) -> int:
    # ~2 MiB per x tile => double-buffered in/out + in-kernel temporaries stay
    # comfortably under the scoped-VMEM defaults on v5e (16 MiB) and v6e/v7x (32 MiB).
    target = 2 * 1024 * 1024
    rows = max(8, min(1024, target // max(row_bytes, 1)))
    rows = (rows // 8) * 8                 # keep the (8, 128) tiling constraint happy
    if seq_len <= rows:
        return seq_len                     # full-extent block is always legal
    return int(rows)


def positional_encoding_forward(x, pe_table, *, seed: int = 0,
                                p: float = DROPOUT_P, train: bool = True):
    """Forward pass of PositionalEncoding.

    Args:
      x:        [seq_len, batch, d_model] float32
      pe_table: [max_len, 1, d_model]     float32 (precomputed buffer)
      train:    if True applies inverted dropout, else identity.
    """
    seq_len, batch, d_model = x.shape
    width = batch * d_model

    # Lane-dense presentation: [seq_len, batch*d_model]; contiguous, free reshape.
    x2 = x.reshape(seq_len, width)
    pe2 = pe_table[:seq_len, 0, :]                     # [seq_len, d_model], NOT pre-broadcast
    seed_arr = jnp.asarray([seed], dtype=jnp.int32)

    tile_rows = _choose_tile_rows(seq_len, width * x2.dtype.itemsize)
    grid = (pl.cdiv(seq_len, tile_rows),)

    keep_threshold = min(int(round(float(p) * 2.0 ** 32)), 2 ** 32 - 1) if p > 0.0 else 0
    inv_keep = 1.0 / (1.0 - float(p)) if float(p) < 1.0 else 0.0

    kernel = functools.partial(
        _pos_enc_kernel,
        d_model=d_model,
        keep_threshold=keep_threshold,
        inv_keep=inv_keep,
        train=bool(train),
    )

    y2 = pl.pallas_call(
        kernel,
        out_shape=jax.ShapeDtypeStruct((seq_len, width), x.dtype),
        grid_spec=pltpu.PrefetchScalarGridSpec(
            num_scalar_prefetch=1,                      # dropout seed lands in SMEM
            grid=grid,
            in_specs=[
                pl.BlockSpec((tile_rows, width), lambda i, seed: (i, 0)),
                pl.BlockSpec((tile_rows, d_model), lambda i, seed: (i, 0)),
            ],
            out_specs=pl.BlockSpec((tile_rows, width), lambda i, seed: (i, 0)),
        ),
        compiler_params=pltpu.CompilerParams(
            dimension_semantics=("parallel",),          # seq tiles are independent
            vmem_limit_bytes=32 * 1024 * 1024,
        ),
    )(seed_arr, x2, pe2)

    return y2.reshape(seq_len, batch, d_model)


if __name__ == "__main__":
    seq_len, batch, d_model = 8, 2, D_MODEL

    key = jax.random.PRNGKey(0)
    x = jax.random.normal(key, (seq_len, batch, d_model), dtype=jnp.float32)
    pe_table = make_positional_encoding_table(d_model, MAX_LEN)

    # Eval mode (dropout is identity) — compare against a pure-JAX reference.
    y_eval = jax.block_until_ready(positional_encoding_forward(x, pe_table, train=False))
    ref = x + pe_table[:seq_len]
    assert y_eval.shape == x.shape and y_eval.dtype == x.dtype
    assert jnp.allclose(y_eval, ref, atol=1e-4, rtol=1e-4)

    # Train mode: every element is either dropped to exactly 0 or scaled by 1/(1-p).
    y_train = jax.block_until_ready(
        positional_encoding_forward(x, pe_table, seed=123, train=True))
    assert y_train.shape == x.shape
    inv_keep = 1.0 / (1.0 - DROPOUT_P)
    kept_ok = jnp.isclose(y_train, y_eval * inv_keep, atol=1e-5, rtol=1e-5)
    dropped = y_train == 0.0
    assert bool(jnp.all(kept_ok | dropped))
    n_dropped = int(jnp.sum(dropped & ~kept_ok))
    assert 0 < n_dropped < y_train.size          # mask is non-trivial for p = 0.1

    print("KERNEL_OK")
</pallas_src>

<mosaic_0001>
module attributes {stable_mosaic.version = 11 : i64} {
  func.func @_pos_enc_kernel(%arg0: i32, %arg1: memref<1xi32, #tpu.memory_space<smem>>, %arg2: memref<8x64xf32, #tpu.memory_space<vmem>>, %arg3: memref<8x32xf32, #tpu.memory_space<vmem>>, %arg4: memref<8x64xf32, #tpu.memory_space<vmem>>) attributes {dimension_semantics = [#tpu.dimension_semantics<parallel>], iteration_bounds = array<i64: 1>, scalar_prefetch = 1 : i64, scratch_operands = 0 : i64, tpu.core_type = #tpu.core_type<tc>, window_params = [{transform_indices = @transform_0, window_bounds = array<i64: 8, 64>}, {transform_indices = @transform_1, window_bounds = array<i64: 8, 32>}, {transform_indices = @transform_2, window_bounds = array<i64: 8, 64>}]} {
    %c0 = arith.constant 0 : index
    %c0_0 = arith.constant 0 : index
    %0 = vector.load %arg2[%c0, %c0_0] : memref<8x64xf32, #tpu.memory_space<vmem>>, vector<8x64xf32>
    %c0_1 = arith.constant 0 : index
    %c0_2 = arith.constant 0 : index
    %1 = vector.load %arg3[%c0_1, %c0_2] : memref<8x32xf32, #tpu.memory_space<vmem>>, vector<8x32xf32>
    %2 = tpu.iota {dimensions = array<i32: 1>} : vector<32x64xi32>
    %3 = tpu.iota {dimensions = array<i32: 0>} : vector<32x64xi32>
    %c31_i32 = arith.constant 31 : i32
    %4 = vector.broadcast %c31_i32 : i32 to vector<32x64xi32>
    %5 = arith.andi %2, %4 : vector<32x64xi32>
    %6 = arith.cmpi eq, %5, %3 : vector<32x64xi32>
    %7 = arith.extui %6 : vector<32x64xi1> to vector<32x64xi32>
    %8 = arith.sitofp %7 : vector<32x64xi32> to vector<32x64xf32>
    %cst = arith.constant dense<0.000000e+00> : vector<8x64xf32>
    %9 = tpu.matmul %1, %8, %cst {dimension_numbers = #tpu.dot_dimension_numbers<[1], [0], [0], [1], [0, 0, 1, 1], [], []>, precision = #tpu.contract_precision<fp32>} : vector<8x32xf32>, vector<32x64xf32>, vector<8x64xf32> -> vector<8x64xf32>
    %10 = arith.addf %0, %9 : vector<8x64xf32>
    %c0_3 = arith.constant 0 : index
    %c0_4 = arith.constant 0 : index
    %11 = vector.load %arg4[%c0_3, %c0_4] : memref<8x64xf32, #tpu.memory_space<vmem>>, vector<8x64xf32>
    tpu.vector_store %arg4[%c0_3, %c0_4], %10 {strides = array<i32>} : memref<8x64xf32, #tpu.memory_space<vmem>>, vector<8x64xf32>,
    return
  }
  func.func @transform_0(%arg0: i32, %arg1: memref<1xi32, #tpu.memory_space<smem>>) -> (i32, i32) {
    %c0_i32 = arith.constant 0 : i32
    %c0_i32_0 = arith.constant 0 : i32
    return %arg0, %c0_i32 : i32, i32
  }
  func.func @transform_1(%arg0: i32, %arg1: memref<1xi32, #tpu.memory_space<smem>>) -> (i32, i32) {
    %c0_i32 = arith.constant 0 : i32
    %c0_i32_0 = arith.constant 0 : i32
    return %arg0, %c0_i32 : i32, i32
  }
  func.func @transform_2(%arg0: i32, %arg1: memref<1xi32, #tpu.memory_space<smem>>) -> (i32, i32) {
    %c0_i32 = arith.constant 0 : i32
    %c0_i32_0 = arith.constant 0 : i32
    return %arg0, %c0_i32 : i32, i32
  }
}

</mosaic_0001>

<llo_original>
// kernel: tpu_custom_call.1
$region0: #{tpu_custom_call.1}
  #allocation0 [shape = 'u32[]', space=smem, size = 0x4, offset = 0x4, fixed_abs, tag = 'smem constant byte address 0x4 - core index']
  #allocation1 [shape = 'u32[144,128]{1,0:T(1,128)}', space=vmem, size = 0x12000, scoped, tag = 'internal scratch']
  #allocation2 [shape = 's32[1]{0}', space=sflag, size = 0x4, scoped, tag = 'scoped memory for tpu_custom_call.1']
  #allocation3 [shape = 's32[1]{0:T(128)S(6)}', space=smem, size = 0x200, scoped, tag = 'prefetched SMEM operand 0']
  %s0 = inlined_call_operand.<no memory space> [shape: s32[1], index: 0, kind: input, shape index: {}]
  %s1 = inlined_call_operand.hbm [shape: f32[8,64], index: 1, kind: input, shape index: {}]
  %s2 = inlined_call_operand.hbm [shape: f32[8,32], index: 2, kind: input, shape index: {}]
  %s3 = inlined_call_operand.hbm [shape: f32[8,64], index: 3, kind: output, shape index: {}]
  %s4 = sld [smem:[#allocation0]]
  $region26: #{tpu_custom_call.1} parent=0
    _
  %s6 = ssub.s32 1, %s4
  %s7 = scalar_select 0, %s6, %s4
  %8 = sst [smem:[#allocation3]] %s0
  $region1: #{tpu_custom_call.1} parent=0
    #allocation4 [shape = 'u8[4096]{0}', space=vmem, size = 0x1000, scoped, tag = 'input window, operand 1, single buffered']
    #allocation5 [shape = 's32[1]{0}', space=sflag, size = 0x4, scoped, tag = 'scoped memory for tpu_custom_call.1']
    #allocation6 [shape = 's32[1]{0}', space=sflag, size = 0x4, scoped, tag = 'scoped memory for tpu_custom_call.1']
    #allocation7 [shape = 'u8[4096]{0}', space=vmem, size = 0x1000, scoped, tag = 'input window, operand 2, single buffered']
    #allocation8 [shape = 's32[1]{0}', space=sflag, size = 0x4, scoped, tag = 'scoped memory for tpu_custom_call.1']
    #allocation9 [shape = 'u8[4096]{0}', space=vmem, size = 0x1000, scoped, tag = 'output window, operand 0, single buffered']
    %9 = vsyncpa [#allocation5], 0
    %10 = vsyncpa [#allocation8], 0
    %11 = vsyncpa [#allocation6], 0
    // Predicated region
    $region2: #{tpu_custom_call.1} parent=1 // pred_check
      _
    $region3: #{tpu_custom_call.1} parent=1 // pred_check_branch
      %13 = sbr.rel (0) target = $region5
    $region4: #{tpu_custom_call.1} parent=1 // pred_region
      %s15 = ssub.s32 128, 128
      %16 = vsyncadd [#allocation5], %s15
      %s18 = sshll.u32 [#allocation4], 4
      %s19 = int_to_ptr.vmem [resolvable:$true] %s18
      %21 = dma.hbm_to_vmem [thread:$0]  %s1, 128, %s19, [#allocation5]
    $region5: #{tpu_custom_call.1} parent=1 // pred_fallthru
      _
    // Predicated region
    $region6: #{tpu_custom_call.1} parent=1 // pred_check
      _
    $region7: #{tpu_custom_call.1} parent=1 // pred_check_branch
      %23 = sbr.rel (0) target = $region9
    $region8: #{tpu_custom_call.1} parent=1 // pred_region
      %s25 = ssub.s32 128, 128
      %26 = vsyncadd [#allocation8], %s25
      %s28 = sshll.u32 [#allocation7], 4
      %s29 = int_to_ptr.vmem [resolvable:$true] %s28
      %31 = dma.hbm_to_vmem [thread:$0]  %s2, 128, %s29, [#allocation8]
    $region9: #{tpu_custom_call.1} parent=1 // pred_fallthru
      _
    // Predicated region
    $region10: #{tpu_custom_call.1} parent=1 // pred_check
      _
    $region11: #{tpu_custom_call.1} parent=1 // pred_check_branch
      %33 = sbr.rel (0) target = $region13
    $region12: #{tpu_custom_call.1} parent=1 // pred_region
      %34 = dma.done [#allocation5], 128
    $region13: #{tpu_custom_call.1} parent=1 // pred_fallthru
      _
    // Predicated region
    $region14: #{tpu_custom_call.1} parent=1 // pred_check
      _
    $region15: #{tpu_custom_call.1} parent=1 // pred_check_branch
      %36 = sbr.rel (0) target = $region17
    $region16: #{tpu_custom_call.1} parent=1 // pred_region
      %37 = dma.done [#allocation8], 128
    $region17: #{tpu_custom_call.1} parent=1 // pred_fallthru
      _
    %v38 = vld [vmem:[#allocation4] sm:$0xff]
    %v39 = vld [vmem:[#allocation7] sm:$0xff]
    %v40 = vlaneseq
    %v41 = vand.u32 %v40, 127
    %v42 = vlaneseq
    %v43 = vshrl.u32 %v42, 7
    %v44 = vadd.s32 %v43, 8
    %v45 = vadd.s32 %v43, 16
    %v46 = vadd.s32 %v43, 24
    %v47 = vand.u32 %v41, 31
    %vm48 = vcmp.eq.s32.totalorder %v47, %v43
    %vm49 = vcmp.eq.s32.totalorder %v47, %v44
    %vm50 = vcmp.eq.s32.totalorder %v47, %v45
    %vm51 = vcmp.eq.s32.totalorder %v47, %v46
    %v52 = vsel %vm48, 1, 0
    %v53 = vsel %vm49, 1, 0
    %v54 = vsel %vm50, 1, 0
    %v55 = vsel %vm51, 1, 0
    %v56 = vcvt.s32.f32 %v52
    %v57 = vcvt.s32.f32 %v53
    %v58 = vcvt.s32.f32 %v54
    %v59 = vcvt.s32.f32 %v55
    %vm60 = vcmask 261120
    %v62 = vsel %vm60, %v39, 0
    %64 = vmatprep.subr.mxu0 0.0
    %v65 = vand.u32 %v56, 4294901760
    %66 = vmatpush1.msra.mxu0 %v65
    %67 = vmatprep.subr.mxu0 0.0
    %v68 = vand.u32 %v57, 4294901760
    %69 = vmatpush1.msra.mxu0 %v68
    %70 = vmatprep.subr.mxu0 0.0
    %v71 = vand.u32 %v58, 4294901760
    %72 = vmatpush1.msra.mxu0 %v71
    %73 = vmatprep.subr.mxu0 0.0
    %v74 = vand.u32 %v59, 4294901760
    %75 = vmatpush1.msra.mxu0 %v74
    %76 = vmatprep.subr.mxu0 0.0
    %77 = vmatpush1.msra.mxu0 0.0
    %78 = vmatprep.subr.mxu0 0.0
    %79 = vmatpush1.msra.mxu0 0.0
    %80 = vmatprep.subr.mxu0 0.0
    %81 = vmatpush1.msra.mxu0 0.0
    %82 = vmatprep.subr.mxu0 0.0
    %83 = vmatpush1.msra.mxu0 0.0
    %84 = vmatprep.subr.mxu0 0.0
    %85 = vmatpush1.msra.mxu0 0.0
    %86 = vmatprep.subr.mxu0 0.0
    %87 = vmatpush1.msra.mxu0 0.0
    %88 = vmatprep.subr.mxu0 0.0
    %89 = vmatpush1.msra.mxu0 0.0
    %90 = vmatprep.subr.mxu0 0.0
    %91 = vmatpush1.msra.mxu0 0.0
    %92 = vmatprep.subr.mxu0 0.0
    %93 = vmatpush1.msra.mxu0 0.0
    %94 = vmatprep.subr.mxu0 0.0
    %95 = vmatpush1.msra.mxu0 0.0
    %96 = vmatprep.subr.mxu0 0.0
    %97 = vmatpush1.msra.mxu0 0.0
    %98 = vmatprep.subr.mxu0 0.0
    %99 = vmatpush1.msra.mxu0 0.0
    %100 = vmatprep.subr.mxu0 0.0
    %101 = vmatpush1.msra.mxu0 0.0
    %102 = vmatprep.subr.mxu0 0.0
    %103 = vmatpush1.msra.mxu0 0.0
    %104 = vmatprep.subr.mxu0 0.0
    %105 = vmatpush1.msra.mxu0 0.0
    %106 = vmatprep.subr.mxu0 0.0
    %107 = vmatpush1.msra.mxu0 0.0
    %108 = vmatprep.subr.mxu0 0.0
    %109 = vmatpush1.msra.mxu0 0.0
    %110 = vmatprep.subr.mxu0 0.0
    %111 = vmatpush1.msra.mxu0 0.0
    %112 = vmatprep.subr.mxu0 0.0
    %113 = vmatpush1.msra.mxu0 0.0
    %114 = vmatprep.subr.mxu0 0.0
    %115 = vmatpush1.msra.mxu0 0.0
    %116 = vmatprep.subr.mxu0 0.0
    %117 = vmatpush1.msra.mxu0 0.0
    %118 = vmatprep.subr.mxu0 0.0
    %119 = vmatpush1.msra.mxu0 0.0
    %120 = vmatprep.subr.mxu0 0.0
    %121 = vmatpush1.msra.mxu0 0.0
    %122 = vmatprep.subr.mxu0 0.0
    %123 = vmatpush1.msra.mxu0 0.0
    %124 = vmatprep.subr.mxu0 0.0
    %125 = vmatpush1.msra.mxu0 0.0
    %126 = vmatprep.subr.mxu0 0.0
    %127 = vmatpush1.msra.mxu0 0.0
    %128 = vmatprep.subr.mxu0 0.0
    %129 = vmatpush1.msra.mxu0 0.0
    %130 = vmatprep.subr.mxu0 0.0
    %131 = vmatpush1.msra.mxu0 0.0
    %132 = vmatprep.mubr.f32.mxu0 0.0
    %v133 = vand.u32 %v62, 4294901760
    %v134 = vsub.f32 %v62, %v133
    %v135 = vand.u32 %v134, 4294901760
    %v136 = vsub.f32 %v134, %v135
    %v137 = vand.u32 %v136, 4294901760
    %138 = vmatmul.mubr.f32.gmra.mrb[0].mxu0 %v137
    %v139 = vpop.f32.mrb[0].mxu0
    %v140 = vadd.f32 0.0, %v139
    %v141 = vpop.f32.mrb[0].mxu0
    %142 = vdwg.mxu0
    %143 = vmatprep.subr.mxu0 0.0
    %v144 = vand.u32 %v56, 4294901760
    %v145 = vsub.f32 %v56, %v144
    %v146 = vand.u32 %v145, 4294901760
    %v147 = vsub.f32 %v145, %v146
    %v148 = vand.u32 %v147, 4294901760
    %149 = vmatpush1.msra.mxu0 %v148
    %150 = vmatprep.subr.mxu0 0.0
    %v151 = vand.u32 %v57, 4294901760
    %v152 = vsub.f32 %v57, %v151
    %v153 = vand.u32 %v152, 4294901760
    %v154 = vsub.f32 %v152, %v153
    %v155 = vand.u32 %v154, 4294901760
    %156 = vmatpush1.msra.mxu0 %v155
    %157 = vmatprep.subr.mxu0 0.0
    %v158 = vand.u32 %v58, 4294901760
    %v159 = vsub.f32 %v58, %v158
    %v160 = vand.u32 %v159, 4294901760
    %v161 = vsub.f32 %v159, %v160
    %v162 = vand.u32 %v161, 4294901760
    %163 = vmatpush1.msra.mxu0 %v162
    %164 = vmatprep.subr.mxu0 0.0
    %v165 = vand.u32 %v59, 4294901760
    %v166 = vsub.f32 %v59, %v165
    %v167 = vand.u32 %v166, 4294901760
    %v168 = vsub.f32 %v166, %v167
    %v169 = vand.u32 %v168, 4294901760
    %170 = vmatpush1.msra.mxu0 %v169
    %171 = vmatprep.subr.mxu0 0.0
    %172 = vmatpush1.msra.mxu0 0.0
    %173 = vmatprep.subr.mxu0 0.0
    %174 = vmatpush1.msra.mxu0 0.0
    %175 = vmatprep.subr.mxu0 0.0
    %176 = vmatpush1.msra.mxu0 0.0
    %177 = vmatprep.subr.mxu0 0.0
    %178 = vmatpush1.msra.mxu0 0.0
    %179 = vmatprep.subr.mxu0 0.0
    %180 = vmatpush1.msra.mxu0 0.0
    %181 = vmatprep.subr.mxu0 0.0
    %182 = vmatpush1.msra.mxu0 0.0
    %183 = vmatprep.subr.mxu0 0.0
    %184 = vmatpush1.msra.mxu0 0.0
    %185 = vmatprep.subr.mxu0 0.0
    %186 = vmatpush1.msra.mxu0 0.0
    %187 = vmatprep.subr.mxu0 0.0
    %188 = vmatpush1.msra.mxu0 0.0
    %189 = vmatprep.subr.mxu0 0.0
    %190 = vmatpush1.msra.mxu0 0.0
    %191 = vmatprep.subr.mxu0 0.0
    %192 = vmatpush1.msra.mxu0 0.0
    %193 = vmatprep.subr.mxu0 0.0
    %194 = vmatpush1.msra.mxu0 0.0
    %195 = vmatprep.subr.mxu0 0.0
    %196 = vmatpush1.msra.mxu0 0.0
    %197 = vmatprep.subr.mxu0 0.0
    %198 = vmatpush1.msra.mxu0 0.0
    %199 = vmatprep.subr.mxu0 0.0
    %200 = vmatpush1.msra.mxu0 0.0
    %201 = vmatprep.subr.mxu0 0.0
    %202 = vmatpush1.msra.mxu0 0.0
    %203 = vmatprep.subr.mxu0 0.0
    %204 = vmatpush1.msra.mxu0 0.0
    %205 = vmatprep.subr.mxu0 0.0
    %206 = vmatpush1.msra.mxu0 0.0
    %207 = vmatprep.subr.mxu0 0.0
    %208 = vmatpush1.msra.mxu0 0.0
    %209 = vmatprep.subr.mxu0 0.0
    %210 = vmatpush1.msra.mxu0 0.0
    %211 = vmatprep.subr.mxu0 0.0
    %212 = vmatpush1.msra.mxu0 0.0
    %213 = vmatprep.subr.mxu0 0.0
    %214 = vmatpush1.msra.mxu0 0.0
    %215 = vmatprep.subr.mxu0 0.0
    %216 = vmatpush1.msra.mxu0 0.0
    %217 = vmatprep.subr.mxu0 0.0
    %218 = vmatpush1.msra.mxu0 0.0
    %219 = vmatprep.subr.mxu0 0.0
    %220 = vmatpush1.msra.mxu0 0.0
    %221 = vmatprep.subr.mxu0 0.0
    %222 = vmatpush1.msra.mxu0 0.0
    %223 = vmatprep.subr.mxu0 0.0
    %224 = vmatpush1.msra.mxu0 0.0
    %225 = vmatprep.subr.mxu0 0.0
    %226 = vmatpush1.msra.mxu0 0.0
    %227 = vmatprep.mubr.f32.mxu0 0.0
    %v228 = vand.u32 %v62, 4294901760
    %229 = vmatmul.mubr.f32.gmra.mrb[0].mxu0 %v228
    %v230 = vpop.f32.mrb[0].mxu0
    %v231 = vadd.f32 %v140, %v230
    %v232 = vpop.f32.mrb[0].mxu0
    %233 = vdwg.mxu0
    %234 = vmatprep.subr.mxu0 0.0
    %v235 = vand.u32 %v56, 4294901760
    %v236 = vsub.f32 %v56, %v235
    %237 = vmatpush1.msra.mxu0 %v236
    %238 = vmatprep.subr.mxu0 0.0
    %v239 = vand.u32 %v57, 4294901760
    %v240 = vsub.f32 %v57, %v239
    %241 = vmatpush1.msra.mxu0 %v240
    %242 = vmatprep.subr.mxu0 0.0
    %v243 = vand.u32 %v58, 4294901760
    %v244 = vsub.f32 %v58, %v243
    %245 = vmatpush1.msra.mxu0 %v244
    %246 = vmatprep.subr.mxu0 0.0
    %v247 = vand.u32 %v59, 4294901760
    %v248 = vsub.f32 %v59, %v247
    %249 = vmatpush1.msra.mxu0 %v248
    %250 = vmatprep.subr.mxu0 0.0
    %251 = vmatpush1.msra.mxu0 0.0
    %252 = vmatprep.subr.mxu0 0.0
    %253 = vmatpush1.msra.mxu0 0.0
    %254 = vmatprep.subr.mxu0 0.0
    %255 = vmatpush1.msra.mxu0 0.0
    %256 = vmatprep.subr.mxu0 0.0
    %257 = vmatpush1.msra.mxu0 0.0
    %258 = vmatprep.subr.mxu0 0.0
    %259 = vmatpush1.msra.mxu0 0.0
    %260 = vmatprep.subr.mxu0 0.0
    %261 = vmatpush1.msra.mxu0 0.0
    %262 = vmatprep.subr.mxu0 0.0
    %263 = vmatpush1.msra.mxu0 0.0
    %264 = vmatprep.subr.mxu0 0.0
    %265 = vmatpush1.msra.mxu0 0.0
    %266 = vmatprep.subr.mxu0 0.0
    %267 = vmatpush1.msra.mxu0 0.0
    %268 = vmatprep.subr.mxu0 0.0
    %269 = vmatpush1.msra.mxu0 0.0
    %270 = vmatprep.subr.mxu0 0.0
    %271 = vmatpush1.msra.mxu0 0.0
    %272 = vmatprep.subr.mxu0 0.0
    %273 = vmatpush1.msra.mxu0 0.0
    %274 = vmatprep.subr.mxu0 0.0
    %275 = vmatpush1.msra.mxu0 0.0
    %276 = vmatprep.subr.mxu0 0.0
    %277 = vmatpush1.msra.mxu0 0.0
    %278 = vmatprep.subr.mxu0 0.0
    %279 = vmatpush1.msra.mxu0 0.0
    %280 = vmatprep.subr.mxu0 0.0
    %281 = vmatpush1.msra.mxu0 0.0
    %282 = vmatprep.subr.mxu0 0.0
    %283 = vmatpush1.msra.mxu0 0.0
    %284 = vmatprep.subr.mxu0 0.0
    %285 = vmatpush1.msra.mxu0 0.0
    %286 = vmatprep.subr.mxu0 0.0
    %287 = vmatpush1.msra.mxu0 0.0
    %288 = vmatprep.subr.mxu0 0.0
    %289 = vmatpush1.msra.mxu0 0.0
    %290 = vmatprep.subr.mxu0 0.0
    %291 = vmatpush1.msra.mxu0 0.0
    %292 = vmatprep.subr.mxu0 0.0
    %293 = vmatpush1.msra.mxu0 0.0
    %294 = vmatprep.subr.mxu0 0.0
    %295 = vmatpush1.msra.mxu0 0.0
    %296 = vmatprep.subr.mxu0 0.0
    %297 = vmatpush1.msra.mxu0 0.0
    %298 = vmatprep.subr.mxu0 0.0
    %299 = vmatpush1.msra.mxu0 0.0
    %300 = vmatprep.subr.mxu0 0.0
    %301 = vmatpush1.msra.mxu0 0.0
    %302 = vmatprep.subr.mxu0 0.0
    %303 = vmatpush1.msra.mxu0 0.0
    %304 = vmatprep.subr.mxu0 0.0
    %305 = vmatpush1.msra.mxu0 0.0
    %306 = vmatprep.mubr.f32.mxu0 0.0
    %v307 = vand.u32 %v62, 4294901760
    %v308 = vsub.f32 %v62, %v307
    %309 = vmatmul.mubr.f32.gmra.mrb[0].mxu0 %v308
    %v310 = vpop.f32.mrb[0].mxu0
    %v311 = vadd.f32 %v231, %v310
    %v312 = vpop.f32.mrb[0].mxu0
    %313 = vdwg.mxu0
    %314 = vmatprep.subr.mxu0 0.0
    %v315 = vand.u32 %v56, 4294901760
    %316 = vmatpush1.msra.mxu0 %v315
    %317 = vmatprep.subr.mxu0 0.0
    %v318 = vand.u32 %v57, 4294901760
    %319 = vmatpush1.msra.mxu0 %v318
    %320 = vmatprep.subr.mxu0 0.0
    %v321 = vand.u32 %v58, 4294901760
    %322 = vmatpush1.msra.mxu0 %v321
    %323 = vmatprep.subr.mxu0 0.0
    %v324 = vand.u32 %v59, 4294901760
    %325 = vmatpush1.msra.mxu0 %v324
    %326 = vmatprep.subr.mxu0 0.0
    %327 = vmatpush1.msra.mxu0 0.0
    %328 = vmatprep.subr.mxu0 0.0
    %329 = vmatpush1.msra.mxu0 0.0
    %330 = vmatprep.subr.mxu0 0.0
    %331 = vmatpush1.msra.mxu0 0.0
    %332 = vmatprep.subr.mxu0 0.0
    %333 = vmatpush1.msra.mxu0 0.0
    %334 = vmatprep.subr.mxu0 0.0
    %335 = vmatpush1.msra.mxu0 0.0
    %336 = vmatprep.subr.mxu0 0.0
    %337 = vmatpush1.msra.mxu0 0.0
    %338 = vmatprep.subr.mxu0 0.0
    %339 = vmatpush1.msra.mxu0 0.0
    %340 = vmatprep.subr.mxu0 0.0
    %341 = vmatpush1.msra.mxu0 0.0
    %342 = vmatprep.subr.mxu0 0.0
    %343 = vmatpush1.msra.mxu0 0.0
    %344 = vmatprep.subr.mxu0 0.0
    %345 = vmatpush1.msra.mxu0 0.0
    %346 = vmatprep.subr.mxu0 0.0
    %347 = vmatpush1.msra.mxu0 0.0
    %348 = vmatprep.subr.mxu0 0.0
    %349 = vmatpush1.msra.mxu0 0.0
    %350 = vmatprep.subr.mxu0 0.0
    %351 = vmatpush1.msra.mxu0 0.0
    %352 = vmatprep.subr.mxu0 0.0
    %353 = vmatpush1.msra.mxu0 0.0
    %354 = vmatprep.subr.mxu0 0.0
    %355 = vmatpush1.msra.mxu0 0.0
    %356 = vmatprep.subr.mxu0 0.0
    %357 = vmatpush1.msra.mxu0 0.0
    %358 = vmatprep.subr.mxu0 0.0
    %359 = vmatpush1.msra.mxu0 0.0
    %360 = vmatprep.subr.mxu0 0.0
    %361 = vmatpush1.msra.mxu0 0.0
    %362 = vmatprep.subr.mxu0 0.0
    %363 = vmatpush1.msra.mxu0 0.0
    %364 = vmatprep.subr.mxu0 0.0
    %365 = vmatpush1.msra.mxu0 0.0
    %366 = vmatprep.subr.mxu0 0.0
    %367 = vmatpush1.msra.mxu0 0.0
    %368 = vmatprep.subr.mxu0 0.0
    %369 = vmatpush1.msra.mxu0 0.0
    %370 = vmatprep.subr.mxu0 0.0
    %371 = vmatpush1.msra.mxu0 0.0
    %372 = vmatprep.subr.mxu0 0.0
    %373 = vmatpush1.msra.mxu0 0.0
    %374 = vmatprep.subr.mxu0 0.0
    %375 = vmatpush1.msra.mxu0 0.0
    %376 = vmatprep.subr.mxu0 0.0
    %377 = vmatpush1.msra.mxu0 0.0
    %378 = vmatprep.subr.mxu0 0.0
    %379 = vmatpush1.msra.mxu0 0.0
    %380 = vmatprep.subr.mxu0 0.0
    %381 = vmatpush1.msra.mxu0 0.0
    %382 = vmatprep.mubr.f32.mxu0 0.0
    %v383 = vand.u32 %v62, 4294901760
    %v384 = vsub.f32 %v62, %v383
    %v385 = vand.u32 %v384, 4294901760
    %386 = vmatmul.mubr.f32.gmra.mrb[0].mxu0 %v385
    %v387 = vpop.f32.mrb[0].mxu0
    %v388 = vadd.f32 %v311, %v387
    %v389 = vpop.f32.mrb[0].mxu0
    %390 = vdwg.mxu0
    %391 = vmatprep.subr.mxu0 0.0
    %v392 = vand.u32 %v56, 4294901760
    %v393 = vsub.f32 %v56, %v392
    %v394 = vand.u32 %v393, 4294901760
    %395 = vmatpush1.msra.mxu0 %v394
    %396 = vmatprep.subr.mxu0 0.0
    %v397 = vand.u32 %v57, 4294901760
    %v398 = vsub.f32 %v57, %v397
    %v399 = vand.u32 %v398, 4294901760
    %400 = vmatpush1.msra.mxu0 %v399
    %401 = vmatprep.subr.mxu0 0.0
    %v402 = vand.u32 %v58, 4294901760
    %v403 = vsub.f32 %v58, %v402
    %v404 = vand.u32 %v403, 4294901760
    %405 = vmatpush1.msra.mxu0 %v404
    %406 = vmatprep.subr.mxu0 0.0
    %v407 = vand.u32 %v59, 4294901760
    %v408 = vsub.f32 %v59, %v407
    %v409 = vand.u32 %v408, 4294901760
    %410 = vmatpush1.msra.mxu0 %v409
    %411 = vmatprep.subr.mxu0 0.0
    %412 = vmatpush1.msra.mxu0 0.0
    %413 = vmatprep.subr.mxu0 0.0
    %414 = vmatpush1.msra.mxu0 0.0
    %415 = vmatprep.subr.mxu0 0.0
    %416 = vmatpush1.msra.mxu0 0.0
    %417 = vmatprep.subr.mxu0 0.0
    %418 = vmatpush1.msra.mxu0 0.0
    %419 = vmatprep.subr.mxu0 0.0
    %420 = vmatpush1.msra.mxu0 0.0
    %421 = vmatprep.subr.mxu0 0.0
    %422 = vmatpush1.msra.mxu0 0.0
    %423 = vmatprep.subr.mxu0 0.0
    %424 = vmatpush1.msra.mxu0 0.0
    %425 = vmatprep.subr.mxu0 0.0
    %426 = vmatpush1.msra.mxu0 0.0
    %427 = vmatprep.subr.mxu0 0.0
    %428 = vmatpush1.msra.mxu0 0.0
    %429 = vmatprep.subr.mxu0 0.0
    %430 = vmatpush1.msra.mxu0 0.0
    %431 = vmatprep.subr.mxu0 0.0
    %432 = vmatpush1.msra.mxu0 0.0
    %433 = vmatprep.subr.mxu0 0.0
    %434 = vmatpush1.msra.mxu0 0.0
    %435 = vmatprep.subr.mxu0 0.0
    %436 = vmatpush1.msra.mxu0 0.0
    %437 = vmatprep.subr.mxu0 0.0
    %438 = vmatpush1.msra.mxu0 0.0
    %439 = vmatprep.subr.mxu0 0.0
    %440 = vmatpush1.msra.mxu0 0.0
    %441 = vmatprep.subr.mxu0 0.0
    %442 = vmatpush1.msra.mxu0 0.0
    %443 = vmatprep.subr.mxu0 0.0
    %444 = vmatpush1.msra.mxu0 0.0
    %445 = vmatprep.subr.mxu0 0.0
    %446 = vmatpush1.msra.mxu0 0.0
    %447 = vmatprep.subr.mxu0 0.0
    %448 = vmatpush1.msra.mxu0 0.0
    %449 = vmatprep.subr.mxu0 0.0
    %450 = vmatpush1.msra.mxu0 0.0
    %451 = vmatprep.subr.mxu0 0.0
    %452 = vmatpush1.msra.mxu0 0.0
    %453 = vmatprep.subr.mxu0 0.0
    %454 = vmatpush1.msra.mxu0 0.0
    %455 = vmatprep.subr.mxu0 0.0
    %456 = vmatpush1.msra.mxu0 0.0
    %457 = vmatprep.subr.mxu0 0.0
    %458 = vmatpush1.msra.mxu0 0.0
    %459 = vmatprep.subr.mxu0 0.0
    %460 = vmatpush1.msra.mxu0 0.0
    %461 = vmatprep.subr.mxu0 0.0
    %462 = vmatpush1.msra.mxu0 0.0
    %463 = vmatprep.subr.mxu0 0.0
    %464 = vmatpush1.msra.mxu0 0.0
    %465 = vmatprep.subr.mxu0 0.0
    %466 = vmatpush1.msra.mxu0 0.0
    %467 = vmatprep.mubr.f32.mxu0 0.0
    %v468 = vand.u32 %v62, 4294901760
    %469 = vmatmul.mubr.f32.gmra.mrb[0].mxu0 %v468
    %v470 = vpop.f32.mrb[0].mxu0
    %v471 = vadd.f32 %v388, %v470
    %v472 = vpop.f32.mrb[0].mxu0
    %473 = vdwg.mxu0
    %474 = vmatprep.subr.mxu0 0.0
    %v475 = vand.u32 %v56, 4294901760
    %476 = vmatpush1.msra.mxu0 %v475
    %477 = vmatprep.subr.mxu0 0.0
    %v478 = vand.u32 %v57, 4294901760
    %479 = vmatpush1.msra.mxu0 %v478
    %480 = vmatprep.subr.mxu0 0.0
    %v481 = vand.u32 %v58, 4294901760
    %482 = vmatpush1.msra.mxu0 %v481
    %483 = vmatprep.subr.mxu0 0.0
    %v484 = vand.u32 %v59, 4294901760
    %485 = vmatpush1.msra.mxu0 %v484
    %486 = vmatprep.subr.mxu0 0.0
    %487 = vmatpush1.msra.mxu0 0.0
    %488 = vmatprep.subr.mxu0 0.0
    %489 = vmatpush1.msra.mxu0 0.0
    %490 = vmatprep.subr.mxu0 0.0
    %491 = vmatpush1.msra.mxu0 0.0
    %492 = vmatprep.subr.mxu0 0.0
    %493 = vmatpush1.msra.mxu0 0.0
    %494 = vmatprep.subr.mxu0 0.0
    %495 = vmatpush1.msra.mxu0 0.0
    %496 = vmatprep.subr.mxu0 0.0
    %497 = vmatpush1.msra.mxu0 0.0
    %498 = vmatprep.subr.mxu0 0.0
    %499 = vmatpush1.msra.mxu0 0.0
    %500 = vmatprep.subr.mxu0 0.0
    %501 = vmatpush1.msra.mxu0 0.0
    %502 = vmatprep.subr.mxu0 0.0
    %503 = vmatpush1.msra.mxu0 0.0
    %504 = vmatprep.subr.mxu0 0.0
    %505 = vmatpush1.msra.mxu0 0.0
    %506 = vmatprep.subr.mxu0 0.0
    %507 = vmatpush1.msra.mxu0 0.0
    %508 = vmatprep.subr.mxu0 0.0
    %509 = vmatpush1.msra.mxu0 0.0
    %510 = vmatprep.subr.mxu0 0.0
    %511 = vmatpush1.msra.mxu0 0.0
    %512 = vmatprep.subr.mxu0 0.0
    %513 = vmatpush1.msra.mxu0 0.0
    %514 = vmatprep.subr.mxu0 0.0
    %515 = vmatpush1.msra.mxu0 0.0
    %516 = vmatprep.subr.mxu0 0.0
    %517 = vmatpush1.msra.mxu0 0.0
    %518 = vmatprep.subr.mxu0 0.0
    %519 = vmatpush1.msra.mxu0 0.0
    %520 = vmatprep.subr.mxu0 0.0
    %521 = vmatpush1.msra.mxu0 0.0
    %522 = vmatprep.subr.mxu0 0.0
    %523 = vmatpush1.msra.mxu0 0.0
    %524 = vmatprep.subr.mxu0 0.0
    %525 = vmatpush1.msra.mxu0 0.0
    %526 = vmatprep.subr.mxu0 0.0
    %527 = vmatpush1.msra.mxu0 0.0
    %528 = vmatprep.subr.mxu0 0.0
    %529 = vmatpush1.msra.mxu0 0.0
    %530 = vmatprep.subr.mxu0 0.0
    %531 = vmatpush1.msra.mxu0 0.0
    %532 = vmatprep.subr.mxu0 0.0
    %533 = vmatpush1.msra.mxu0 0.0
    %534 = vmatprep.subr.mxu0 0.0
    %535 = vmatpush1.msra.mxu0 0.0
    %536 = vmatprep.subr.mxu0 0.0
    %537 = vmatpush1.msra.mxu0 0.0
    %538 = vmatprep.subr.mxu0 0.0
    %539 = vmatpush1.msra.mxu0 0.0
    %540 = vmatprep.subr.mxu0 0.0
    %541 = vmatpush1.msra.mxu0 0.0
    %542 = vmatprep.mubr.f32.mxu0 0.0
    %v543 = vand.u32 %v62, 4294901760
    %544 = vmatmul.mubr.f32.gmra.mrb[0].mxu0 %v543
    %v545 = vpop.f32.mrb[0].mxu0
    %v546 = vadd.f32 %v471, %v545
    %v547 = vpop.f32.mrb[0].mxu0
    %548 = vdwg.mxu0
    %v549 = vadd.f32 %v38, %v546
    %vm550 = vcmask 523264
    %551 = vst.msk [vmem:[#allocation9] sm:$0xff] %vm550, %v549
    // Predicated region
    $region18: #{tpu_custom_call.1} parent=1 // pred_check
      _
    $region19: #{tpu_custom_call.1} parent=1 // pred_check_branch
      %553 = sbr.rel (0) target = $region21
    $region20: #{tpu_custom_call.1} parent=1 // pred_region
      %s555 = ssub.s32 128, 128
      %556 = vsyncadd [#allocation6], %s555
      %s558 = sshll.u32 [#allocation9], 4
      %s559 = int_to_ptr.vmem [resolvable:$true] %s558
      %561 = dma.vmem_to_hbm [thread:$0]  %s559, 128, %s3, [#allocation6]
    $region21: #{tpu_custom_call.1} parent=1 // pred_fallthru
      _
    // Predicated region
    $region22: #{tpu_custom_call.1} parent=1 // pred_check
      _
    $region23: #{tpu_custom_call.1} parent=1 // pred_check_branch
      %563 = sbr.rel (0) target = $region25
    $region24: #{tpu_custom_call.1} parent=1 // pred_region
      %564 = dma.done [#allocation6], 128
    $region25: #{tpu_custom_call.1} parent=1 // pred_fallthru
      _
    %565 = vsyncpa [#allocation5], 1
    %566 = vsyncpa [#allocation8], 1
    %567 = vsyncpa [#allocation6], 1

</llo_original>
